<compile_context>
chip_gen: v7x
topology: tpu7x:2x2x1
jax: 0.10.0
libtpu: 0.0.40
codegen_flags: <defaults>
</compile_context>

<pallas_src>
import math
import jax
import jax.numpy as jnp
from jax.experimental import pallas as pl
from jax.experimental.pallas import tpu as pltpu

# ---------------- static model config (consistent with TrunkNet) ----------------
IN_SIZE = 8
HIDDEN = (32, 64, 32)     # hidden_size list
OUT_SIZE = 5
BATCH = 2

LANE = 128
SUBLANE = 8
MAX_TB = 512              # max batch-tile rows per grid step
MIN_SPLIT = 256           # only split the batch into >=2 tiles if each tile >= this


def _round_up(n, m):
    return ((n + m - 1) // m) * m


# ------------------------------- the Pallas kernel -------------------------------
def make_trunk_kernel(n_layers):
    """kernel(x_ref, w0, b0, w1, b1, ..., w_{L-1}, b_{L-1}, out_ref)"""

    def kernel(x_ref, *refs):
        out_ref = refs[-1]
        h = x_ref[...]                                   # (TB, K0_pad) f32, batch on sublanes
        for l in range(n_layers):
            w = refs[2 * l][...]                         # (K_pad, N_pad) bf16, VMEM-resident
            b = refs[2 * l + 1][...]                     # (1, N_pad) f32
            # bf16 only at the MXU boundary (v5e has no bf16 VPU/EUP); f32 accumulation.
            h = jnp.dot(h.astype(jnp.bfloat16), w,
                        preferred_element_type=jnp.float32) + b
            if l < n_layers - 1:                         # final Linear has no activation
                h = jnp.tanh(h)
        out_ref[...] = h                                 # narrow (TB, OUT_SIZE) f32 store

    return kernel


# ------------------------------- one-time parameter prep -------------------------------
def prepare_params(params):
    """Pad/cast weights once (outside the per-call forward):
       - layer-0 K padded only to a sublane multiple (8), hidden dims to 128 lanes,
         final output dim left unpadded,
       - weights stored as bf16, biases as f32 (1, N)."""
    ws, bs = params
    n_layers = len(ws)
    dims = [ws[0].shape[0]] + [w.shape[1] for w in ws]
    pdims = ([_round_up(dims[0], SUBLANE)]
             + [_round_up(d, LANE) for d in dims[1:-1]]
             + [dims[-1]])

    consts = []
    for l in range(n_layers):
        wp = (jnp.zeros((pdims[l], pdims[l + 1]), jnp.float32)
              .at[:dims[l], :dims[l + 1]].set(ws[l])
              .astype(jnp.bfloat16))
        bp_ = (jnp.zeros((1, pdims[l + 1]), jnp.float32)
               .at[:, :dims[l + 1]].set(bs[l][None, :]))
        consts += [wp, bp_]

    return {"consts": tuple(consts), "dims": tuple(dims),
            "pdims": tuple(pdims), "n_layers": n_layers}


# ------------------------------- wrapper -------------------------------
def trunk_forward(prepped, x):
    consts = prepped["consts"]
    dims = prepped["dims"]
    pdims = prepped["pdims"]
    n_layers = prepped["n_layers"]

    b_, in_size = x.shape
    assert in_size == dims[0]
    in_pad = pdims[0]
    out_size = dims[-1]

    # adaptive batch tiling: sublane-align, cap tile at MAX_TB rows, split into
    # >=2 tiles only when each tile stays >= MIN_SPLIT rows (v7x megacore) so the
    # round-up waste stays <= ~8 rows per tile instead of up to a whole tile.
    bp = _round_up(max(b_, SUBLANE), SUBLANE)
    nt = pl.cdiv(bp, MAX_TB)
    if nt == 1 and bp >= 2 * MIN_SPLIT:
        nt = 2
    tb = _round_up(pl.cdiv(bp, nt), SUBLANE)
    bp = nt * tb

    # only sublane-level padding of the batch + (usually no-op) K padding of columns
    xp = jnp.zeros((bp, in_pad), jnp.float32).at[:b_, :in_size].set(x.astype(jnp.float32))

    out = pl.pallas_call(
        make_trunk_kernel(n_layers),
        grid=(nt,),
        in_specs=([pl.BlockSpec((tb, in_pad), lambda i: (i, 0))]
                  + [pl.BlockSpec(c.shape, lambda i: (0, 0)) for c in consts]),
        out_specs=pl.BlockSpec((tb, out_size), lambda i: (i, 0)),
        out_shape=jax.ShapeDtypeStruct((bp, out_size), jnp.float32),
        compiler_params=pltpu.CompilerParams(dimension_semantics=("parallel",)),
    )(xp, *consts)

    return out[:b_]


# ------------------------------- deterministic parameter init -------------------------------
def init_params(key, in_size=IN_SIZE, hidden=HIDDEN, out_size=OUT_SIZE):
    # matches torch.nn.Linear default init: U(-1/sqrt(fan_in), 1/sqrt(fan_in)) for W and b
    sizes = [in_size] + list(hidden) + [out_size]
    n_layers = len(sizes) - 1
    keys = jax.random.split(key, 2 * n_layers)
    ws, bs = [], []
    for l in range(n_layers):
        bound = 1.0 / math.sqrt(sizes[l])
        w = jax.random.uniform(keys[2 * l], (sizes[l], sizes[l + 1]), jnp.float32, -bound, bound)
        b = jax.random.uniform(keys[2 * l + 1], (sizes[l + 1],), jnp.float32, -bound, bound)
        ws.append(w)
        bs.append(b)
    return ws, bs


# ------------------------------- pure-JAX reference (for validation) -------------------------------
def reference_forward(params, x):
    ws, bs = params
    h = x
    for l in range(len(ws)):
        h = h @ ws[l] + bs[l]
        if l < len(ws) - 1:
            h = jnp.tanh(h)
    return h


# ------------------------------- main -------------------------------
if __name__ == "__main__":
    key = jax.random.PRNGKey(0)
    pkey, xkey = jax.random.split(key, 2)

    params = init_params(pkey)
    prepped = prepare_params(params)          # pad + bf16-cast weights ONCE
    x = jax.random.normal(xkey, (BATCH, IN_SIZE), jnp.float32)

    out = trunk_forward(prepped, x)
    out = jax.block_until_ready(out)

    ref = reference_forward(params, x)
    err = float(jnp.max(jnp.abs(out - ref)))
    assert out.shape == (BATCH, OUT_SIZE), out.shape
    # bf16 MXU operands (f32 accumulation) vs f32 reference -> loosened tolerance
    assert err < 5e-2, f"max abs err vs f32 reference = {err}"
    print("KERNEL_OK")
</pallas_src>

<mosaic_0001>
module attributes {stable_mosaic.version = 11 : i64} {
  func.func @kernel(%arg0: i32, %arg1: memref<8x8xf32, #tpu.memory_space<vmem>>, %arg2: memref<8x128xbf16, #tpu.memory_space<vmem>>, %arg3: memref<1x128xf32, #tpu.memory_space<vmem>>, %arg4: memref<128x128xbf16, #tpu.memory_space<vmem>>, %arg5: memref<1x128xf32, #tpu.memory_space<vmem>>, %arg6: memref<128x128xbf16, #tpu.memory_space<vmem>>, %arg7: memref<1x128xf32, #tpu.memory_space<vmem>>, %arg8: memref<128x5xbf16, #tpu.memory_space<vmem>>, %arg9: memref<1x5xf32, #tpu.memory_space<vmem>>, %arg10: memref<8x5xf32, #tpu.memory_space<vmem>>) attributes {dimension_semantics = [#tpu.dimension_semantics<parallel>], iteration_bounds = array<i64: 1>, scalar_prefetch = 0 : i64, scratch_operands = 0 : i64, tpu.core_type = #tpu.core_type<tc>, window_params = [{transform_indices = @transform_0, window_bounds = array<i64: 8, 8>}, {pipeline_mode = #tpu.pipeline_mode<synchronous>, transform_indices = @transform_1, window_bounds = array<i64: 8, 128>}, {pipeline_mode = #tpu.pipeline_mode<synchronous>, transform_indices = @transform_2, window_bounds = array<i64: 1, 128>}, {pipeline_mode = #tpu.pipeline_mode<synchronous>, transform_indices = @transform_3, window_bounds = array<i64: 128, 128>}, {pipeline_mode = #tpu.pipeline_mode<synchronous>, transform_indices = @transform_4, window_bounds = array<i64: 1, 128>}, {pipeline_mode = #tpu.pipeline_mode<synchronous>, transform_indices = @transform_5, window_bounds = array<i64: 128, 128>}, {pipeline_mode = #tpu.pipeline_mode<synchronous>, transform_indices = @transform_6, window_bounds = array<i64: 1, 128>}, {pipeline_mode = #tpu.pipeline_mode<synchronous>, transform_indices = @transform_7, window_bounds = array<i64: 128, 5>}, {pipeline_mode = #tpu.pipeline_mode<synchronous>, transform_indices = @transform_8, window_bounds = array<i64: 1, 5>}, {transform_indices = @transform_9, window_bounds = array<i64: 8, 5>}]} {
    %c0 = arith.constant 0 : index
    %c0_0 = arith.constant 0 : index
    %0 = vector.load %arg1[%c0, %c0_0] : memref<8x8xf32, #tpu.memory_space<vmem>>, vector<8x8xf32>
    %c0_1 = arith.constant 0 : index
    %c0_2 = arith.constant 0 : index
    %1 = vector.load %arg2[%c0_1, %c0_2] : memref<8x128xbf16, #tpu.memory_space<vmem>>, vector<8x128xbf16>
    %c0_3 = arith.constant 0 : index
    %c0_4 = arith.constant 0 : index
    %2 = vector.load %arg3[%c0_3, %c0_4] : memref<1x128xf32, #tpu.memory_space<vmem>>, vector<1x128xf32>
    %3 = arith.truncf %0 : vector<8x8xf32> to vector<8x8xbf16>
    %cst = arith.constant dense<0.000000e+00> : vector<8x128xf32>
    %4 = tpu.matmul %3, %1, %cst {dimension_numbers = #tpu.dot_dimension_numbers<[1], [0], [0], [1], [0, 0, 1, 1], [], []>} : vector<8x8xbf16>, vector<8x128xbf16>, vector<8x128xf32> -> vector<8x128xf32>
    %5 = vector.broadcast %2 : vector<1x128xf32> to vector<8x128xf32>
    %6 = arith.addf %4, %5 : vector<8x128xf32>
    %7 = math.tanh %6 : vector<8x128xf32>
    %c0_5 = arith.constant 0 : index
    %c0_6 = arith.constant 0 : index
    %8 = vector.load %arg4[%c0_5, %c0_6] : memref<128x128xbf16, #tpu.memory_space<vmem>>, vector<128x128xbf16>
    %c0_7 = arith.constant 0 : index
    %c0_8 = arith.constant 0 : index
    %9 = vector.load %arg5[%c0_7, %c0_8] : memref<1x128xf32, #tpu.memory_space<vmem>>, vector<1x128xf32>
    %10 = arith.truncf %7 : vector<8x128xf32> to vector<8x128xbf16>
    %cst_9 = arith.constant dense<0.000000e+00> : vector<8x128xf32>
    %11 = tpu.matmul %10, %8, %cst_9 {dimension_numbers = #tpu.dot_dimension_numbers<[1], [0], [0], [1], [0, 0, 1, 1], [], []>} : vector<8x128xbf16>, vector<128x128xbf16>, vector<8x128xf32> -> vector<8x128xf32>
    %12 = vector.broadcast %9 : vector<1x128xf32> to vector<8x128xf32>
    %13 = arith.addf %11, %12 : vector<8x128xf32>
    %14 = math.tanh %13 : vector<8x128xf32>
    %c0_10 = arith.constant 0 : index
    %c0_11 = arith.constant 0 : index
    %15 = vector.load %arg6[%c0_10, %c0_11] : memref<128x128xbf16, #tpu.memory_space<vmem>>, vector<128x128xbf16>
    %c0_12 = arith.constant 0 : index
    %c0_13 = arith.constant 0 : index
    %16 = vector.load %arg7[%c0_12, %c0_13] : memref<1x128xf32, #tpu.memory_space<vmem>>, vector<1x128xf32>
    %17 = arith.truncf %14 : vector<8x128xf32> to vector<8x128xbf16>
    %cst_14 = arith.constant dense<0.000000e+00> : vector<8x128xf32>
    %18 = tpu.matmul %17, %15, %cst_14 {dimension_numbers = #tpu.dot_dimension_numbers<[1], [0], [0], [1], [0, 0, 1, 1], [], []>} : vector<8x128xbf16>, vector<128x128xbf16>, vector<8x128xf32> -> vector<8x128xf32>
    %19 = vector.broadcast %16 : vector<1x128xf32> to vector<8x128xf32>
    %20 = arith.addf %18, %19 : vector<8x128xf32>
    %21 = math.tanh %20 : vector<8x128xf32>
    %c0_15 = arith.constant 0 : index
    %c0_16 = arith.constant 0 : index
    %22 = vector.load %arg8[%c0_15, %c0_16] : memref<128x5xbf16, #tpu.memory_space<vmem>>, vector<128x5xbf16>
    %c0_17 = arith.constant 0 : index
    %c0_18 = arith.constant 0 : index
    %23 = vector.load %arg9[%c0_17, %c0_18] : memref<1x5xf32, #tpu.memory_space<vmem>>, vector<1x5xf32>
    %24 = arith.truncf %21 : vector<8x128xf32> to vector<8x128xbf16>
    %cst_19 = arith.constant dense<0.000000e+00> : vector<8x5xf32>
    %25 = tpu.matmul %24, %22, %cst_19 {dimension_numbers = #tpu.dot_dimension_numbers<[1], [0], [0], [1], [0, 0, 1, 1], [], []>} : vector<8x128xbf16>, vector<128x5xbf16>, vector<8x5xf32> -> vector<8x5xf32>
    %26 = vector.broadcast %23 : vector<1x5xf32> to vector<8x5xf32>
    %27 = arith.addf %25, %26 : vector<8x5xf32>
    %c0_20 = arith.constant 0 : index
    %c0_21 = arith.constant 0 : index
    %28 = vector.load %arg10[%c0_20, %c0_21] : memref<8x5xf32, #tpu.memory_space<vmem>>, vector<8x5xf32>
    tpu.vector_store %arg10[%c0_20, %c0_21], %27 {strides = array<i32>} : memref<8x5xf32, #tpu.memory_space<vmem>>, vector<8x5xf32>,
    return
  }
  func.func @transform_0(%arg0: i32) -> (i32, i32) {
    %c0_i32 = arith.constant 0 : i32
    %c0_i32_0 = arith.constant 0 : i32
    return %arg0, %c0_i32 : i32, i32
  }
  func.func @transform_1(%arg0: i32) -> (i32, i32) {
    %c0_i32 = arith.constant 0 : i32
    %c0_i32_0 = arith.constant 0 : i32
    %c0_i32_1 = arith.constant 0 : i32
    return %c0_i32, %c0_i32_0 : i32, i32
  }
  func.func @transform_2(%arg0: i32) -> (i32, i32) {
    %c0_i32 = arith.constant 0 : i32
    %c0_i32_0 = arith.constant 0 : i32
    %c0_i32_1 = arith.constant 0 : i32
    return %c0_i32, %c0_i32_0 : i32, i32
  }
  func.func @transform_3(%arg0: i32) -> (i32, i32) {
    %c0_i32 = arith.constant 0 : i32
    %c0_i32_0 = arith.constant 0 : i32
    %c0_i32_1 = arith.constant 0 : i32
    return %c0_i32, %c0_i32_0 : i32, i32
  }
  func.func @transform_4(%arg0: i32) -> (i32, i32) {
    %c0_i32 = arith.constant 0 : i32
    %c0_i32_0 = arith.constant 0 : i32
    %c0_i32_1 = arith.constant 0 : i32
    return %c0_i32, %c0_i32_0 : i32, i32
  }
  func.func @transform_5(%arg0: i32) -> (i32, i32) {
    %c0_i32 = arith.constant 0 : i32
    %c0_i32_0 = arith.constant 0 : i32
    %c0_i32_1 = arith.constant 0 : i32
    return %c0_i32, %c0_i32_0 : i32, i32
  }
  func.func @transform_6(%arg0: i32) -> (i32, i32) {
    %c0_i32 = arith.constant 0 : i32
    %c0_i32_0 = arith.constant 0 : i32
    %c0_i32_1 = arith.constant 0 : i32
    return %c0_i32, %c0_i32_0 : i32, i32
  }
  func.func @transform_7(%arg0: i32) -> (i32, i32) {
    %c0_i32 = arith.constant 0 : i32
    %c0_i32_0 = arith.constant 0 : i32
    %c0_i32_1 = arith.constant 0 : i32
    return %c0_i32, %c0_i32_0 : i32, i32
  }
  func.func @transform_8(%arg0: i32) -> (i32, i32) {
    %c0_i32 = arith.constant 0 : i32
    %c0_i32_0 = arith.constant 0 : i32
    %c0_i32_1 = arith.constant 0 : i32
    return %c0_i32, %c0_i32_0 : i32, i32
  }
  func.func @transform_9(%arg0: i32) -> (i32, i32) {
    %c0_i32 = arith.constant 0 : i32
    %c0_i32_0 = arith.constant 0 : i32
    return %arg0, %c0_i32 : i32, i32
  }
}

</mosaic_0001>

<llo_original>
// kernel: tpu_custom_call.1
$region0: #{tpu_custom_call.1}
  #allocation0 [shape = 'u32[]', space=smem, size = 0x4, offset = 0x4, fixed_abs, tag = 'smem constant byte address 0x4 - core index']
  #allocation1 [shape = 'u32[144,128]{1,0:T(1,128)}', space=vmem, size = 0x12000, scoped, tag = 'internal scratch']
  %s0 = inlined_call_operand.vmem [shape: f32[8,8], index: 0, kind: input, shape index: {}]
  %s1 = inlined_call_operand.vmem [shape: bf16[8,128], index: 1, kind: input, shape index: {}]
  %s2 = inlined_call_operand.vmem [shape: f32[1,128], index: 2, kind: input, shape index: {}]
  %s3 = inlined_call_operand.vmem [shape: bf16[128,128], index: 3, kind: input, shape index: {}]
  %s4 = inlined_call_operand.vmem [shape: f32[1,128], index: 4, kind: input, shape index: {}]
  %s5 = inlined_call_operand.hbm [shape: bf16[128,128], index: 5, kind: input, shape index: {}]
  %s6 = inlined_call_operand.vmem [shape: f32[1,128], index: 6, kind: input, shape index: {}]
  %s7 = inlined_call_operand.vmem [shape: bf16[128,5], index: 7, kind: input, shape index: {}]
  %s8 = inlined_call_operand.vmem [shape: f32[1,5], index: 8, kind: input, shape index: {}]
  %s9 = inlined_call_operand.hbm [shape: f32[8,5], index: 9, kind: output, shape index: {}]
  %s10 = sld [smem:[#allocation0]]
  $region50: #{tpu_custom_call.1} parent=0
    _
  %s12 = ssub.s32 1, %s10
  %s13 = scalar_select 0, %s12, %s10
  $region1: #{tpu_custom_call.1} parent=0
    #allocation2 [shape = 'u8[32768]{0}', space=vmem, size = 0x8000, scoped, tag = 'input window, operand 5, single buffered']
    #allocation3 [shape = 's32[1]{0}', space=sflag, size = 0x4, scoped, tag = 'scoped memory for tpu_custom_call.1']
    #allocation4 [shape = 's32[1]{0}', space=sflag, size = 0x4, scoped, tag = 'scoped memory for tpu_custom_call.1']
    #allocation5 [shape = 'u8[4096]{0}', space=vmem, size = 0x1000, scoped, tag = 'output window, operand 0, single buffered']
    %14 = vsyncpa [#allocation3], 0
    %15 = vsyncpa [#allocation4], 0
    // Predicated region
    $region2: #{tpu_custom_call.1} parent=1 // pred_check
      _
    $region3: #{tpu_custom_call.1} parent=1 // pred_check_branch
      %17 = sbr.rel (0) target = $region5
    $region4: #{tpu_custom_call.1} parent=1 // pred_region
      _
    $region5: #{tpu_custom_call.1} parent=1 // pred_fallthru
      _
    // Predicated region
    $region6: #{tpu_custom_call.1} parent=1 // pred_check
      _
    $region7: #{tpu_custom_call.1} parent=1 // pred_check_branch
      %19 = sbr.rel (0) target = $region9
    $region8: #{tpu_custom_call.1} parent=1 // pred_region
      _
    $region9: #{tpu_custom_call.1} parent=1 // pred_fallthru
      _
    // Predicated region
    $region10: #{tpu_custom_call.1} parent=1 // pred_check
      _
    $region11: #{tpu_custom_call.1} parent=1 // pred_check_branch
      %21 = sbr.rel (0) target = $region13
    $region12: #{tpu_custom_call.1} parent=1 // pred_region
      _
    $region13: #{tpu_custom_call.1} parent=1 // pred_fallthru
      _
    // Predicated region
    $region14: #{tpu_custom_call.1} parent=1 // pred_check
      _
    $region15: #{tpu_custom_call.1} parent=1 // pred_check_branch
      %23 = sbr.rel (0) target = $region17
    $region16: #{tpu_custom_call.1} parent=1 // pred_region
      _
    $region17: #{tpu_custom_call.1} parent=1 // pred_fallthru
      _
    // Predicated region
    $region18: #{tpu_custom_call.1} parent=1 // pred_check
      _
    $region19: #{tpu_custom_call.1} parent=1 // pred_check_branch
      %25 = sbr.rel (0) target = $region21
    $region20: #{tpu_custom_call.1} parent=1 // pred_region
      _
    $region21: #{tpu_custom_call.1} parent=1 // pred_fallthru
      _
    // Predicated region
    $region22: #{tpu_custom_call.1} parent=1 // pred_check
      _
    $region23: #{tpu_custom_call.1} parent=1 // pred_check_branch
      %27 = sbr.rel (0) target = $region25
    $region24: #{tpu_custom_call.1} parent=1 // pred_region
      %s29 = ssub.s32 1024, 1024
      %30 = vsyncadd [#allocation3], %s29
      %s31 = sshll.u32 [#allocation2], 4
      %s32 = int_to_ptr.vmem [resolvable:$true] %s31
      %37 = dma.hbm_to_vmem [thread:$0]  %s5, 1024, %s32, [#allocation3], 64, 64, 4
    $region25: #{tpu_custom_call.1} parent=1 // pred_fallthru
      _
    // Predicated region
    $region26: #{tpu_custom_call.1} parent=1 // pred_check
      _
    $region27: #{tpu_custom_call.1} parent=1 // pred_check_branch
      %39 = sbr.rel (0) target = $region29
    $region28: #{tpu_custom_call.1} parent=1 // pred_region
      _
    $region29: #{tpu_custom_call.1} parent=1 // pred_fallthru
      _
    // Predicated region
    $region30: #{tpu_custom_call.1} parent=1 // pred_check
      _
    $region31: #{tpu_custom_call.1} parent=1 // pred_check_branch
      %41 = sbr.rel (0) target = $region33
    $region32: #{tpu_custom_call.1} parent=1 // pred_region
      _
    $region33: #{tpu_custom_call.1} parent=1 // pred_fallthru
      _
    // Predicated region
    $region34: #{tpu_custom_call.1} parent=1 // pred_check
      _
    $region35: #{tpu_custom_call.1} parent=1 // pred_check_branch
      %43 = sbr.rel (0) target = $region37
    $region36: #{tpu_custom_call.1} parent=1 // pred_region
      _
    $region37: #{tpu_custom_call.1} parent=1 // pred_fallthru
      _
    // Predicated region
    $region38: #{tpu_custom_call.1} parent=1 // pred_check
      _
    $region39: #{tpu_custom_call.1} parent=1 // pred_check_branch
      %45 = sbr.rel (0) target = $region41
    $region40: #{tpu_custom_call.1} parent=1 // pred_region
      %46 = dma.done [#allocation3], 1024
    $region41: #{tpu_custom_call.1} parent=1 // pred_fallthru
      _
    %v48 = vld [vmem:[%s0] sm:$0xff]
    %v49 = vld [vmem:[%s1] sm:$0xf]
    %v50 = vld [vmem:[%s2] sm:$0x1]
    %v51 = vpack.c.bf16 %v48, %v48
    %v53 = vlaneseq
    %v54 = vshrl.u32 %v53, 7
    %v55 = vsub.s32 0, %v54
    %v56 = vrot.slane %v50, %v55
    %vm58 = vcmask 64512
    %v60 = vsel %vm58, %v51, 0
    %vm62 = vcmask 1043456
    %v64 = vsel %vm62, %v49, 0
    %66 = vmatprep.subr.bf16.mxu0 0
    %67 = vmatpush1.bf16.msra.mxu0 %v64
    %68 = vmatprep.subr.bf16.mxu0 0
    %69 = vmatpush1.bf16.msra.mxu0 0
    %70 = vmatprep.subr.bf16.mxu0 0
    %71 = vmatpush1.bf16.msra.mxu0 0
    %72 = vmatprep.subr.bf16.mxu0 0
    %73 = vmatpush1.bf16.msra.mxu0 0
    %74 = vmatprep.subr.bf16.mxu0 0
    %75 = vmatpush1.bf16.msra.mxu0 0
    %76 = vmatprep.subr.bf16.mxu0 0
    %77 = vmatpush1.bf16.msra.mxu0 0
    %78 = vmatprep.subr.bf16.mxu0 0
    %79 = vmatpush1.bf16.msra.mxu0 0
    %80 = vmatprep.subr.bf16.mxu0 0
    %81 = vmatpush1.bf16.msra.mxu0 0
    %82 = vmatprep.subr.bf16.mxu0 0
    %83 = vmatpush1.bf16.msra.mxu0 0
    %84 = vmatprep.subr.bf16.mxu0 0
    %85 = vmatpush1.bf16.msra.mxu0 0
    %86 = vmatprep.subr.bf16.mxu0 0
    %87 = vmatpush1.bf16.msra.mxu0 0
    %88 = vmatprep.subr.bf16.mxu0 0
    %89 = vmatpush1.bf16.msra.mxu0 0
    %90 = vmatprep.subr.bf16.mxu0 0
    %91 = vmatpush1.bf16.msra.mxu0 0
    %92 = vmatprep.subr.bf16.mxu0 0
    %93 = vmatpush1.bf16.msra.mxu0 0
    %94 = vmatprep.subr.bf16.mxu0 0
    %95 = vmatpush1.bf16.msra.mxu0 0
    %96 = vmatprep.subr.bf16.mxu0 0
    %97 = vmatpush1.bf16.msra.mxu0 0
    %98 = vmatprep.mubr.bf16.mxu0 0
    %99 = vmatmul.mubr.bf16.gmra.mrb[0].mxu0 %v60
    %v100 = vpop.f32.mrb[0].mxu0
    %v101 = vadd.f32 %v56, %v100
    %v102 = vpop.f32.mrb[0].mxu0
    %v103 = vpop.f32.mrb[0].mxu0
    %v104 = vpop.f32.mrb[0].mxu0
    %105 = vdwg.mxu0
    %v106 = vtanh.pop %v101
    %v107 = vld [vmem:[%s3] sm:$0xf]
    %v108 = vld [vmem:[%s3 + $0x4] sm:$0xf]
    %v109 = vld [vmem:[%s3 + $0x8] sm:$0xf]
    %v110 = vld [vmem:[%s3 + $0xc] sm:$0xf]
    %v111 = vld [vmem:[%s3 + $0x10] sm:$0xf]
    %v112 = vld [vmem:[%s3 + $0x14] sm:$0xf]
    %v113 = vld [vmem:[%s3 + $0x18] sm:$0xf]
    %v114 = vld [vmem:[%s3 + $0x1c] sm:$0xf]
    %v115 = vld [vmem:[%s3 + $0x20] sm:$0xf]
    %v116 = vld [vmem:[%s3 + $0x24] sm:$0xf]
    %v117 = vld [vmem:[%s3 + $0x28] sm:$0xf]
    %v118 = vld [vmem:[%s3 + $0x2c] sm:$0xf]
    %v119 = vld [vmem:[%s3 + $0x30] sm:$0xf]
    %v120 = vld [vmem:[%s3 + $0x34] sm:$0xf]
    %v121 = vld [vmem:[%s3 + $0x38] sm:$0xf]
    %v122 = vld [vmem:[%s3 + $0x3c] sm:$0xf]
    %v123 = vld [vmem:[%s4] sm:$0x1]
    %v124 = vpack.c.bf16 %v106, %v106
    %v126 = vlaneseq
    %v127 = vshrl.u32 %v126, 7
    %v128 = vsub.s32 0, %v127
    %v129 = vrot.slane %v123, %v128
    %v147 = vunpack.c.l.b16 %v107
    %v148 = vunpack.c.l.b16 %v108
    %v149 = vunpack.c.l.b16 %v109
    %v150 = vunpack.c.l.b16 %v110
    %v151 = vunpack.c.l.b16 %v111
    %v152 = vunpack.c.l.b16 %v112
    %v153 = vunpack.c.l.b16 %v113
    %v154 = vunpack.c.l.b16 %v114
    %v155 = vunpack.c.l.b16 %v115
    %v156 = vunpack.c.l.b16 %v116
    %v157 = vunpack.c.l.b16 %v117
    %v158 = vunpack.c.l.b16 %v118
    %v159 = vunpack.c.l.b16 %v119
    %v160 = vunpack.c.l.b16 %v120
    %v161 = vunpack.c.l.b16 %v121
    %v162 = vunpack.c.l.b16 %v122
    %v163 = vpack.c.b16 %v148, %v147
    %v164 = vpack.c.b16 %v150, %v149
    %v165 = vpack.c.b16 %v152, %v151
    %v166 = vpack.c.b16 %v154, %v153
    %v167 = vpack.c.b16 %v156, %v155
    %v168 = vpack.c.b16 %v158, %v157
    %v169 = vpack.c.b16 %v160, %v159
    %v170 = vpack.c.b16 %v162, %v161
    %179 = vmatprep.subr.bf16.mxu0 0
    %180 = vmatpush1.bf16.msra.mxu0 %v163
    %181 = vmatprep.subr.bf16.mxu0 0
    %182 = vmatpush1.bf16.msra.mxu0 %v164
    %183 = vmatprep.subr.bf16.mxu0 0
    %184 = vmatpush1.bf16.msra.mxu0 %v165
    %185 = vmatprep.subr.bf16.mxu0 0
    %186 = vmatpush1.bf16.msra.mxu0 %v166
    %187 = vmatprep.subr.bf16.mxu0 0
    %188 = vmatpush1.bf16.msra.mxu0 %v167
    %189 = vmatprep.subr.bf16.mxu0 0
    %190 = vmatpush1.bf16.msra.mxu0 %v168
    %191 = vmatprep.subr.bf16.mxu0 0
    %192 = vmatpush1.bf16.msra.mxu0 %v169
    %193 = vmatprep.subr.bf16.mxu0 0
    %194 = vmatpush1.bf16.msra.mxu0 %v170
    %195 = vmatprep.subr.bf16.mxu0 0
    %196 = vmatpush1.bf16.msra.mxu0 0
    %197 = vmatprep.subr.bf16.mxu0 0
    %198 = vmatpush1.bf16.msra.mxu0 0
    %199 = vmatprep.subr.bf16.mxu0 0
    %200 = vmatpush1.bf16.msra.mxu0 0
    %201 = vmatprep.subr.bf16.mxu0 0
    %202 = vmatpush1.bf16.msra.mxu0 0
    %203 = vmatprep.subr.bf16.mxu0 0
    %204 = vmatpush1.bf16.msra.mxu0 0
    %205 = vmatprep.subr.bf16.mxu0 0
    %206 = vmatpush1.bf16.msra.mxu0 0
    %207 = vmatprep.subr.bf16.mxu0 0
    %208 = vmatpush1.bf16.msra.mxu0 0
    %209 = vmatprep.subr.bf16.mxu0 0
    %210 = vmatpush1.bf16.msra.mxu0 0
    %211 = vmatprep.mubr.bf16.mxu0 0
    %212 = vmatmul.mubr.bf16.gmra.mrb[0].mxu0 %v124
    %v213 = vpop.f32.mrb[0].mxu0
    %v214 = vadd.f32 %v129, %v213
    %v215 = vpop.f32.mrb[0].mxu0
    %v216 = vpop.f32.mrb[0].mxu0
    %v217 = vpop.f32.mrb[0].mxu0
    %218 = vdwg.mxu0
    %v219 = vtanh.pop %v214
    %v220 = vld [vmem:[#allocation2] sm:$0xf]
    %v221 = vld [vmem:[#allocation2 + $0x4] sm:$0xf]
    %v222 = vld [vmem:[#allocation2 + $0x8] sm:$0xf]
    %v223 = vld [vmem:[#allocation2 + $0xc] sm:$0xf]
    %v224 = vld [vmem:[#allocation2 + $0x10] sm:$0xf]
    %v225 = vld [vmem:[#allocation2 + $0x14] sm:$0xf]
    %v226 = vld [vmem:[#allocation2 + $0x18] sm:$0xf]
    %v227 = vld [vmem:[#allocation2 + $0x1c] sm:$0xf]
    %v228 = vld [vmem:[#allocation2 + $0x20] sm:$0xf]
    %v229 = vld [vmem:[#allocation2 + $0x24] sm:$0xf]
    %v230 = vld [vmem:[#allocation2 + $0x28] sm:$0xf]
    %v231 = vld [vmem:[#allocation2 + $0x2c] sm:$0xf]
    %v232 = vld [vmem:[#allocation2 + $0x30] sm:$0xf]
    %v233 = vld [vmem:[#allocation2 + $0x34] sm:$0xf]
    %v234 = vld [vmem:[#allocation2 + $0x38] sm:$0xf]
    %v235 = vld [vmem:[#allocation2 + $0x3c] sm:$0xf]
    %v236 = vld [vmem:[%s6] sm:$0x1]
    %v237 = vpack.c.bf16 %v219, %v219
    %v239 = vlaneseq
    %v240 = vshrl.u32 %v239, 7
    %v241 = vsub.s32 0, %v240
    %v242 = vrot.slane %v236, %v241
    %v260 = vunpack.c.l.b16 %v220
    %v261 = vunpack.c.l.b16 %v221
    %v262 = vunpack.c.l.b16 %v222
    %v263 = vunpack.c.l.b16 %v223
    %v264 = vunpack.c.l.b16 %v224
    %v265 = vunpack.c.l.b16 %v225
    %v266 = vunpack.c.l.b16 %v226
    %v267 = vunpack.c.l.b16 %v227
    %v268 = vunpack.c.l.b16 %v228
    %v269 = vunpack.c.l.b16 %v229
    %v270 = vunpack.c.l.b16 %v230
    %v271 = vunpack.c.l.b16 %v231
    %v272 = vunpack.c.l.b16 %v232
    %v273 = vunpack.c.l.b16 %v233
    %v274 = vunpack.c.l.b16 %v234
    %v275 = vunpack.c.l.b16 %v235
    %v276 = vpack.c.b16 %v261, %v260
    %v277 = vpack.c.b16 %v263, %v262
    %v278 = vpack.c.b16 %v265, %v264
    %v279 = vpack.c.b16 %v267, %v266
    %v280 = vpack.c.b16 %v269, %v268
    %v281 = vpack.c.b16 %v271, %v270
    %v282 = vpack.c.b16 %v273, %v272
    %v283 = vpack.c.b16 %v275, %v274
    %292 = vmatprep.subr.bf16.mxu0 0
    %293 = vmatpush1.bf16.msra.mxu0 %v276
    %294 = vmatprep.subr.bf16.mxu0 0
    %295 = vmatpush1.bf16.msra.mxu0 %v277
    %296 = vmatprep.subr.bf16.mxu0 0
    %297 = vmatpush1.bf16.msra.mxu0 %v278
    %298 = vmatprep.subr.bf16.mxu0 0
    %299 = vmatpush1.bf16.msra.mxu0 %v279
    %300 = vmatprep.subr.bf16.mxu0 0
    %301 = vmatpush1.bf16.msra.mxu0 %v280
    %302 = vmatprep.subr.bf16.mxu0 0
    %303 = vmatpush1.bf16.msra.mxu0 %v281
    %304 = vmatprep.subr.bf16.mxu0 0
    %305 = vmatpush1.bf16.msra.mxu0 %v282
    %306 = vmatprep.subr.bf16.mxu0 0
    %307 = vmatpush1.bf16.msra.mxu0 %v283
    %308 = vmatprep.subr.bf16.mxu0 0
    %309 = vmatpush1.bf16.msra.mxu0 0
    %310 = vmatprep.subr.bf16.mxu0 0
    %311 = vmatpush1.bf16.msra.mxu0 0
    %312 = vmatprep.subr.bf16.mxu0 0
    %313 = vmatpush1.bf16.msra.mxu0 0
    %314 = vmatprep.subr.bf16.mxu0 0
    %315 = vmatpush1.bf16.msra.mxu0 0
    %316 = vmatprep.subr.bf16.mxu0 0
    %317 = vmatpush1.bf16.msra.mxu0 0
    %318 = vmatprep.subr.bf16.mxu0 0
    %319 = vmatpush1.bf16.msra.mxu0 0
    %320 = vmatprep.subr.bf16.mxu0 0
    %321 = vmatpush1.bf16.msra.mxu0 0
    %322 = vmatprep.subr.bf16.mxu0 0
    %323 = vmatpush1.bf16.msra.mxu0 0
    %324 = vmatprep.mubr.bf16.mxu0 0
    %325 = vmatmul.mubr.bf16.gmra.mrb[0].mxu0 %v237
    %v326 = vpop.f32.mrb[0].mxu0
    %v327 = vadd.f32 %v242, %v326
    %v328 = vpop.f32.mrb[0].mxu0
    %v329 = vpop.f32.mrb[0].mxu0
    %v330 = vpop.f32.mrb[0].mxu0
    %331 = vdwg.mxu0
    %v332 = vtanh.pop %v327
    %v333 = vld [vmem:[%s7] sm:$0xf]
    %v334 = vld [vmem:[%s7 + $0x4] sm:$0xf]
    %v335 = vld [vmem:[%s7 + $0x8] sm:$0xf]
    %v336 = vld [vmem:[%s7 + $0xc] sm:$0xf]
    %v337 = vld [vmem:[%s7 + $0x10] sm:$0xf]
    %v338 = vld [vmem:[%s7 + $0x14] sm:$0xf]
    %v339 = vld [vmem:[%s7 + $0x18] sm:$0xf]
    %v340 = vld [vmem:[%s7 + $0x1c] sm:$0xf]
    %v341 = vld [vmem:[%s7 + $0x20] sm:$0xf]
    %v342 = vld [vmem:[%s7 + $0x24] sm:$0xf]
    %v343 = vld [vmem:[%s7 + $0x28] sm:$0xf]
    %v344 = vld [vmem:[%s7 + $0x2c] sm:$0xf]
    %v345 = vld [vmem:[%s7 + $0x30] sm:$0xf]
    %v346 = vld [vmem:[%s7 + $0x34] sm:$0xf]
    %v347 = vld [vmem:[%s7 + $0x38] sm:$0xf]
    %v348 = vld [vmem:[%s7 + $0x3c] sm:$0xf]
    %v349 = vld [vmem:[%s8] sm:$0x1]
    %v350 = vpack.c.bf16 %v332, %v332
    %v352 = vlaneseq
    %v353 = vshrl.u32 %v352, 7
    %v354 = vsub.s32 0, %v353
    %v355 = vrot.slane %v349, %v354
    %v373 = vunpack.c.l.b16 %v333
    %v374 = vunpack.c.l.b16 %v334
    %v375 = vunpack.c.l.b16 %v335
    %v376 = vunpack.c.l.b16 %v336
    %v377 = vunpack.c.l.b16 %v337
    %v378 = vunpack.c.l.b16 %v338
    %v379 = vunpack.c.l.b16 %v339
    %v380 = vunpack.c.l.b16 %v340
    %v381 = vunpack.c.l.b16 %v341
    %v382 = vunpack.c.l.b16 %v342
    %v383 = vunpack.c.l.b16 %v343
    %v384 = vunpack.c.l.b16 %v344
    %v385 = vunpack.c.l.b16 %v345
    %v386 = vunpack.c.l.b16 %v346
    %v387 = vunpack.c.l.b16 %v347
    %v388 = vunpack.c.l.b16 %v348
    %v389 = vpack.c.b16 %v374, %v373
    %v390 = vpack.c.b16 %v376, %v375
    %v391 = vpack.c.b16 %v378, %v377
    %v392 = vpack.c.b16 %v380, %v379
    %v393 = vpack.c.b16 %v382, %v381
    %v394 = vpack.c.b16 %v384, %v383
    %v395 = vpack.c.b16 %v386, %v385
    %v396 = vpack.c.b16 %v388, %v387
    %405 = vmatprep.subr.bf16.mxu0 0
    %406 = vmatpush1.bf16.msra.mxu0 %v389
    %407 = vmatprep.subr.bf16.mxu0 0
    %408 = vmatpush1.bf16.msra.mxu0 %v390
    %409 = vmatprep.subr.bf16.mxu0 0
    %410 = vmatpush1.bf16.msra.mxu0 %v391
    %411 = vmatprep.subr.bf16.mxu0 0
    %412 = vmatpush1.bf16.msra.mxu0 %v392
    %413 = vmatprep.subr.bf16.mxu0 0
    %414 = vmatpush1.bf16.msra.mxu0 %v393
    %415 = vmatprep.subr.bf16.mxu0 0
    %416 = vmatpush1.bf16.msra.mxu0 %v394
    %417 = vmatprep.subr.bf16.mxu0 0
    %418 = vmatpush1.bf16.msra.mxu0 %v395
    %419 = vmatprep.subr.bf16.mxu0 0
    %420 = vmatpush1.bf16.msra.mxu0 %v396
    %421 = vmatprep.subr.bf16.mxu0 0
    %422 = vmatpush1.bf16.msra.mxu0 0
    %423 = vmatprep.subr.bf16.mxu0 0
    %424 = vmatpush1.bf16.msra.mxu0 0
    %425 = vmatprep.subr.bf16.mxu0 0
    %426 = vmatpush1.bf16.msra.mxu0 0
    %427 = vmatprep.subr.bf16.mxu0 0
    %428 = vmatpush1.bf16.msra.mxu0 0
    %429 = vmatprep.subr.bf16.mxu0 0
    %430 = vmatpush1.bf16.msra.mxu0 0
    %431 = vmatprep.subr.bf16.mxu0 0
    %432 = vmatpush1.bf16.msra.mxu0 0
    %433 = vmatprep.subr.bf16.mxu0 0
    %434 = vmatpush1.bf16.msra.mxu0 0
    %435 = vmatprep.subr.bf16.mxu0 0
    %436 = vmatpush1.bf16.msra.mxu0 0
    %437 = vmatprep.mubr.bf16.mxu0 0
    %438 = vmatmul.mubr.bf16.gmra.mrb[0].mxu0 %v350
    %v439 = vpop.f32.mrb[0].mxu0
    %v440 = vadd.f32 %v355, %v439
    %v441 = vpop.f32.mrb[0].mxu0
    %v442 = vpop.f32.mrb[0].mxu0
    %v443 = vpop.f32.mrb[0].mxu0
    %444 = vdwg.mxu0
    %vm445 = vcmask 39936
    %446 = vst.msk [vmem:[#allocation5] sm:$0xff] %vm445, %v440
    // Predicated region
    $region42: #{tpu_custom_call.1} parent=1 // pred_check
      _
    $region43: #{tpu_custom_call.1} parent=1 // pred_check_branch
      %448 = sbr.rel (0) target = $region45
    $region44: #{tpu_custom_call.1} parent=1 // pred_region
      %s450 = ssub.s32 128, 128
      %451 = vsyncadd [#allocation4], %s450
      %s453 = sshll.u32 [#allocation5], 4
      %s454 = int_to_ptr.vmem [resolvable:$true] %s453
      %456 = dma.vmem_to_hbm [thread:$0]  %s454, 128, %s9, [#allocation4]
    $region45: #{tpu_custom_call.1} parent=1 // pred_fallthru
      _
    // Predicated region
    $region46: #{tpu_custom_call.1} parent=1 // pred_check
      _
    $region47: #{tpu_custom_call.1} parent=1 // pred_check_branch
      %458 = sbr.rel (0) target = $region49
    $region48: #{tpu_custom_call.1} parent=1 // pred_region
      %459 = dma.done [#allocation4], 128
    $region49: #{tpu_custom_call.1} parent=1 // pred_fallthru
      _
    %460 = vsyncpa [#allocation3], 1
    %461 = vsyncpa [#allocation4], 1

</llo_original>
